<compile_context>
chip_gen: v7x
topology: tpu7x:2x2x1
jax: 0.10.0
libtpu: 0.0.40
codegen_flags: <defaults>
</compile_context>

<pallas_src>
import functools

import numpy as np

import jax
import jax.numpy as jnp
from jax import lax
from jax.experimental import pallas as pl
from jax.experimental.pallas import tpu as pltpu


def _leaky(x, slope):
    # 0 <= slope <= 1: max(x, slope*x) == LeakyReLU(x) and is 2 VPU ops.
    if 0.0 <= slope <= 1.0:
        return jnp.maximum(x, slope * x)
    return jnp.where(x > 0, x, slope * x)


def residual_stack_kernel(x_ref, halo_ref, w1_ref, b1_ref, w2s_ref, b2s_ref,
                          out_ref, win_ref,
                          *, Bb, C, Tt, K, dilation, pad, neg_slope,
                          mxu_dtype, act_in_f32):
    def act(v):
        # LeakyReLU; f32 math unless everything is bf16 end-to-end (v6e/v7x).
        if act_in_f32:
            v = v.astype(jnp.float32)
        return _leaky(v, neg_slope).astype(mxu_dtype)

    ims, xs = [], []
    for b in range(Bb):                              # Bb is small & static
        xb = x_ref[b]                                # (C, Tt), input dtype
        xs.append(xb.astype(mxu_dtype))              # skip-branch operand (raw c)

        # Stage the reflect-padded, activated window [halo_L | body | halo_R]
        # (C, Tt + 2*pad).  Halo columns were pre-gathered by the wrapper with
        # reflection applied only at the TRUE sequence ends, so the kernel
        # needs no reflection logic and no lane-1 stores.
        win_ref[b, :, pad:pad + Tt] = act(xb)
        if pad > 0:
            win_ref[b, :, :pad] = act(halo_ref[b, 0, :, :pad])
            win_ref[b, :, pad + Tt:] = act(halo_ref[b, 0, :, pad:])

        # im2col as a register value: K shifted full-width loads, sublane concat.
        taps = [win_ref[b, :, k * dilation:k * dilation + Tt] for k in range(K)]
        ims.append(jnp.concatenate(taps, axis=0) if K > 1 else taps[0])

    # Concatenate batch elements along the lane axis (Tt is lane-aligned when
    # Bb > 1), so each MXU dot sees a wide (Bb*Tt) N dimension.
    im = jnp.concatenate(ims, axis=-1) if Bb > 1 else ims[0]      # (K*C, Bb*Tt)
    x_cat = jnp.concatenate(xs, axis=-1) if Bb > 1 else xs[0]     # (C,   Bb*Tt)

    # Dilated conv: all K taps as ONE MXU dot; bias added once, in f32.
    y1 = jnp.dot(w1_ref[...], im, preferred_element_type=jnp.float32) + b1_ref[...]
    h2 = _leaky(y1, neg_slope)                                    # f32 elementwise

    # Fused stage-2: [w2 | ws] @ [h2 ; x] + (b2 + bs)  — one dot for conv2+skip.
    rhs2 = jnp.concatenate([h2.astype(mxu_dtype), x_cat], axis=0)  # (2C, Bb*Tt)
    y = jnp.dot(w2s_ref[...], rhs2, preferred_element_type=jnp.float32) + b2s_ref[...]

    for b in range(Bb):
        out_ref[b] = y[:, b * Tt:(b + 1) * Tt].astype(out_ref.dtype)


def residual_stack(c, params, *, kernel_size=3, dilation=1, negative_slope=0.2,
                   mxu_dtype=None, block_batch=None, time_block=None):
    """c: (B, C, T). Returns (B, C, T) in c.dtype.

    mxu_dtype=None -> bf16 if the input is bf16 (recommended on v6e/v7x,
    halves HBM traffic for this memory-bound op), else f32.
    """
    B, C, T = c.shape
    K = kernel_size
    assert (K - 1) % 2 == 0, "only odd kernel sizes (non-causal) supported"
    pad = (K - 1) // 2 * dilation
    assert pad <= T - 1, "time axis too short for reflection padding"

    if mxu_dtype is None:
        mxu_dtype = jnp.bfloat16 if c.dtype == jnp.bfloat16 else jnp.float32
    act_in_f32 = not (c.dtype == jnp.bfloat16 and mxu_dtype == jnp.bfloat16)

    # ---- time tiling (mandatory for long T on v7x's 64 MiB VMEM) ------------
    if time_block is None:
        Tt = T
        if T > 8192:                              # pick a lane-dense divisor
            for cand in range(8192, 127, -128):
                if T % cand == 0:
                    Tt = cand
                    break
    else:
        Tt = time_block
        assert T % Tt == 0 and (Tt == T or Tt % 128 == 0)
    n_t = T // Tt

    # ---- batch blocking (more lanes per step / bigger DMAs) ------------------
    if block_batch is None:
        Bb = 1
        for cand in range(1, B + 1):
            if B % cand:
                continue
            if cand * Tt > 2048:                  # keep VMEM / lane width sane
                break
            if cand > 1 and Tt % 128 != 0:        # lane-aligned batch concat only
                continue
            if cand > 1 and (B // cand) * n_t < 2:  # keep both v7x TCs busy
                continue
            Bb = cand
    else:
        Bb = block_batch
        assert B % Bb == 0
        assert Bb == 1 or Tt % 128 == 0
    n_b = B // Bb

    # ---- hoisted weight prep (done once) -------------------------------------
    # Fold K taps into (C, K*C); fuse conv2 + skip into (C, 2C); biases f32.
    w1 = jnp.transpose(params["w1"], (0, 2, 1)).reshape(C, K * C).astype(mxu_dtype)
    w2s = jnp.concatenate([params["w2"][:, :, 0], params["ws"][:, :, 0]],
                          axis=1).astype(mxu_dtype)                  # (C, 2C)
    b1 = params["b1"].reshape(C, 1).astype(jnp.float32)
    b2s = (params["b2"] + params["bs"]).reshape(C, 1).astype(jnp.float32)

    # ---- halo gather: tiny (B, n_t, C, 2*pad) array, reflection ONLY at the
    # true sequence ends (never at tile boundaries).  Cost ~ 2*pad*n_t columns,
    # i.e. negligible vs. a full jnp.pad pass over the input in HBM.
    halo_w = 2 * pad if pad > 0 else 2
    if pad > 0:
        starts = np.arange(n_t) * Tt
        left = starts[:, None] - pad + np.arange(pad)[None, :]
        right = starts[:, None] + Tt + np.arange(pad)[None, :]
        idx = np.concatenate([left, right], axis=1)                  # (n_t, 2*pad)
        idx = np.where(idx < 0, -idx, idx)                           # reflect start
        idx = np.where(idx > T - 1, 2 * (T - 1) - idx, idx)          # reflect end
        halo = jnp.take(c, jnp.asarray(idx.reshape(-1), dtype=jnp.int32), axis=2)
        halo = halo.reshape(B, C, n_t, 2 * pad).transpose(0, 2, 1, 3)
    else:
        halo = jnp.zeros((B, n_t, C, halo_w), c.dtype)               # unused

    kern = functools.partial(
        residual_stack_kernel, Bb=Bb, C=C, Tt=Tt, K=K, dilation=dilation,
        pad=pad, neg_slope=negative_slope, mxu_dtype=mxu_dtype,
        act_in_f32=act_in_f32)

    def full(arr):
        n = arr.ndim
        # TODO(synk): pipeline_mode=pl.Buffered(1) for these constant operands.
        return pl.BlockSpec(arr.shape, lambda *_: (0,) * n)

    return pl.pallas_call(
        kern,
        out_shape=jax.ShapeDtypeStruct((B, C, T), c.dtype),
        grid_spec=pltpu.PrefetchScalarGridSpec(
            num_scalar_prefetch=0,
            grid=(n_b, n_t),
            in_specs=[
                pl.BlockSpec((Bb, C, Tt), lambda b, t: (b, 0, t)),       # input
                pl.BlockSpec((Bb, 1, C, halo_w), lambda b, t: (b, t, 0, 0)),
                full(w1), full(b1), full(w2s), full(b2s),
            ],
            out_specs=pl.BlockSpec((Bb, C, Tt), lambda b, t: (b, 0, t)),
            scratch_shapes=[pltpu.VMEM((Bb, C, Tt + 2 * pad), mxu_dtype)],
        ),
        compiler_params=pltpu.CompilerParams(
            dimension_semantics=("parallel", "parallel"),   # shards across TCs
            vmem_limit_bytes=48 * 1024 * 1024,              # safe on v5e/v6e/v7x
        ),
    )(c, halo, w1, b1, w2s, b2s)


def residual_stack_ref(c, params, *, kernel_size=3, dilation=1, negative_slope=0.2):
    """Pure-JAX reference using lax.conv_general_dilated (NCH layout)."""
    K = kernel_size
    pad = (K - 1) // 2 * dilation
    dn = ("NCH", "OIH", "NCH")

    def conv(x, w, b, rhs_dil):
        y = lax.conv_general_dilated(x, w, window_strides=(1,), padding="VALID",
                                     rhs_dilation=(rhs_dil,), dimension_numbers=dn)
        return y + b[None, :, None]

    h = jnp.where(c > 0, c, negative_slope * c)
    h = jnp.pad(h, ((0, 0), (0, 0), (pad, pad)), mode="reflect")
    h = conv(h, params["w1"], params["b1"], dilation)
    h = jnp.where(h > 0, h, negative_slope * h)
    h = conv(h, params["w2"], params["b2"], 1)
    skip = conv(c, params["ws"], params["bs"], 1)
    return h + skip


if __name__ == "__main__":
    B, C, T = 2, 32, 128
    K = 3

    key = jax.random.PRNGKey(0)
    ks = jax.random.split(key, 8)
    params = {
        "w1": jax.random.normal(ks[0], (C, C, K), jnp.float32) * 0.1,  # (out, in, k)
        "b1": jax.random.normal(ks[1], (C,), jnp.float32) * 0.1,
        "w2": jax.random.normal(ks[2], (C, C, 1), jnp.float32) * 0.1,
        "b2": jax.random.normal(ks[3], (C,), jnp.float32) * 0.1,
        "ws": jax.random.normal(ks[4], (C, C, 1), jnp.float32) * 0.1,
        "bs": jax.random.normal(ks[5], (C,), jnp.float32) * 0.1,
    }
    c = jax.random.normal(ks[6], (B, C, T), jnp.float32)
    ref1 = residual_stack_ref(c, params, kernel_size=K, dilation=1)

    # Default config: f32 operands, per-batch grid, full-T tiles.
    out = jax.block_until_ready(residual_stack(c, params, kernel_size=K, dilation=1))
    assert out.shape == (B, C, T)
    assert jnp.allclose(out, ref1, atol=1e-4, rtol=1e-4), \
        float(jnp.max(jnp.abs(out - ref1)))

    # dilation=3: multi-column reflection at the true sequence ends.
    ref3 = residual_stack_ref(c, params, kernel_size=K, dilation=3)
    out3 = jax.block_until_ready(residual_stack(c, params, kernel_size=K, dilation=3))
    assert jnp.allclose(out3, ref3, atol=1e-4, rtol=1e-4), \
        float(jnp.max(jnp.abs(out3 - ref3)))

    # Batch-blocked step: 2 batch elements concatenated along lanes per step.
    out_bb = jax.block_until_ready(
        residual_stack(c, params, kernel_size=K, dilation=1, block_batch=2))
    assert jnp.allclose(out_bb, ref1, atol=1e-4, rtol=1e-4)

    # Time-tiled path with halo (4 tiles of 128), dilation=3 so halos span
    # tile boundaries; reflection only at the true ends.
    T2 = 512
    c2 = jax.random.normal(ks[7], (B, C, T2), jnp.float32)
    ref_t = residual_stack_ref(c2, params, kernel_size=K, dilation=3)
    out_t = jax.block_until_ready(
        residual_stack(c2, params, kernel_size=K, dilation=3,
                       time_block=128, block_batch=2))
    assert jnp.allclose(out_t, ref_t, atol=1e-4, rtol=1e-4), \
        float(jnp.max(jnp.abs(out_t - ref_t)))

    # bf16 end-to-end (activations + MXU operands); loose tolerance vs f32 ref.
    out_bf16 = jax.block_until_ready(
        residual_stack(c.astype(jnp.bfloat16), params, kernel_size=K, dilation=1))
    assert out_bf16.dtype == jnp.bfloat16
    assert float(jnp.max(jnp.abs(out_bf16.astype(jnp.float32) - ref1))) < 2.5e-1

    print("KERNEL_OK")
</pallas_src>

<mosaic_0001>
module attributes {stable_mosaic.version = 11 : i64} {
  func.func @residual_stack_kernel(%arg0: i32, %arg1: i32, %arg2: memref<1x32x128xf32, #tpu.memory_space<vmem>>, %arg3: memref<1x1x32x2xf32, #tpu.memory_space<vmem>>, %arg4: memref<32x96xf32, #tpu.memory_space<vmem>>, %arg5: memref<32x1xf32, #tpu.memory_space<vmem>>, %arg6: memref<32x64xf32, #tpu.memory_space<vmem>>, %arg7: memref<32x1xf32, #tpu.memory_space<vmem>>, %arg8: memref<1x32x128xf32, #tpu.memory_space<vmem>>, %arg9: memref<1x32x130xf32, #tpu.memory_space<vmem>>) attributes {dimension_semantics = [#tpu.dimension_semantics<parallel>, #tpu.dimension_semantics<parallel>], iteration_bounds = array<i64: 2, 1>, scalar_prefetch = 0 : i64, scratch_operands = 1 : i64, tpu.core_type = #tpu.core_type<tc>, window_params = [{transform_indices = @transform_0, window_bounds = array<i64: 1, 32, 128>}, {transform_indices = @transform_1, window_bounds = array<i64: 1, 1, 32, 2>}, {pipeline_mode = #tpu.pipeline_mode<synchronous>, transform_indices = @transform_2, window_bounds = array<i64: 32, 96>}, {pipeline_mode = #tpu.pipeline_mode<synchronous>, transform_indices = @transform_3, window_bounds = array<i64: 32, 1>}, {pipeline_mode = #tpu.pipeline_mode<synchronous>, transform_indices = @transform_4, window_bounds = array<i64: 32, 64>}, {pipeline_mode = #tpu.pipeline_mode<synchronous>, transform_indices = @transform_5, window_bounds = array<i64: 32, 1>}, {transform_indices = @transform_6, window_bounds = array<i64: 1, 32, 128>}]} {
    %c0 = arith.constant 0 : index
    %c0_0 = arith.constant 0 : index
    %c0_1 = arith.constant 0 : index
    %0 = vector.load %arg2[%c0, %c0_0, %c0_1] : memref<1x32x128xf32, #tpu.memory_space<vmem>>, vector<1x32x128xf32>
    %1 = vector.shape_cast %0 : vector<1x32x128xf32> to vector<32x128xf32>
    %cst = arith.constant 2.000000e-01 : f32
    %2 = vector.broadcast %cst : f32 to vector<32x128xf32>
    %3 = arith.mulf %2, %1 : vector<32x128xf32>
    %4 = arith.maximumf %1, %3 : vector<32x128xf32>
    %c0_2 = arith.constant 0 : index
    %c0_3 = arith.constant 0 : index
    %c1 = arith.constant 1 : index
    %5 = vector.load %arg9[%c0_2, %c0_3, %c1] : memref<1x32x130xf32, #tpu.memory_space<vmem>>, vector<1x32x128xf32>
    %6 = vector.shape_cast %5 : vector<1x32x128xf32> to vector<32x128xf32>
    %7 = vector.shape_cast %4 : vector<32x128xf32> to vector<1x32x128xf32>
    tpu.vector_store %arg9[%c0_2, %c0_3, %c1], %7 {strides = array<i32>} : memref<1x32x130xf32, #tpu.memory_space<vmem>>, vector<1x32x128xf32>,
    %c0_4 = arith.constant 0 : index
    %c0_5 = arith.constant 0 : index
    %c0_6 = arith.constant 0 : index
    %c0_7 = arith.constant 0 : index
    %8 = vector.load %arg3[%c0_4, %c0_5, %c0_6, %c0_7] : memref<1x1x32x2xf32, #tpu.memory_space<vmem>>, vector<1x1x32x1xf32>
    %9 = vector.shape_cast %8 : vector<1x1x32x1xf32> to vector<32x1xf32>
    %cst_8 = arith.constant 2.000000e-01 : f32
    %10 = vector.broadcast %cst_8 : f32 to vector<32x1xf32>
    %11 = arith.mulf %10, %9 : vector<32x1xf32>
    %12 = arith.maximumf %9, %11 : vector<32x1xf32>
    %c0_9 = arith.constant 0 : index
    %c0_10 = arith.constant 0 : index
    %c0_11 = arith.constant 0 : index
    %13 = vector.load %arg9[%c0_9, %c0_10, %c0_11] : memref<1x32x130xf32, #tpu.memory_space<vmem>>, vector<1x32x1xf32>
    %14 = vector.shape_cast %13 : vector<1x32x1xf32> to vector<32x1xf32>
    %15 = vector.shape_cast %12 : vector<32x1xf32> to vector<1x32x1xf32>
    tpu.vector_store %arg9[%c0_9, %c0_10, %c0_11], %15 {strides = array<i32>} : memref<1x32x130xf32, #tpu.memory_space<vmem>>, vector<1x32x1xf32>,
    %c0_12 = arith.constant 0 : index
    %c0_13 = arith.constant 0 : index
    %c0_14 = arith.constant 0 : index
    %c1_15 = arith.constant 1 : index
    %16 = vector.load %arg3[%c0_12, %c0_13, %c0_14, %c1_15] : memref<1x1x32x2xf32, #tpu.memory_space<vmem>>, vector<1x1x32x1xf32>
    %17 = vector.shape_cast %16 : vector<1x1x32x1xf32> to vector<32x1xf32>
    %cst_16 = arith.constant 2.000000e-01 : f32
    %18 = vector.broadcast %cst_16 : f32 to vector<32x1xf32>
    %19 = arith.mulf %18, %17 : vector<32x1xf32>
    %20 = arith.maximumf %17, %19 : vector<32x1xf32>
    %c0_17 = arith.constant 0 : index
    %c0_18 = arith.constant 0 : index
    %c129 = arith.constant 129 : index
    %21 = vector.load %arg9[%c0_17, %c0_18, %c129] : memref<1x32x130xf32, #tpu.memory_space<vmem>>, vector<1x32x1xf32>
    %22 = vector.shape_cast %21 : vector<1x32x1xf32> to vector<32x1xf32>
    %23 = vector.shape_cast %20 : vector<32x1xf32> to vector<1x32x1xf32>
    tpu.vector_store %arg9[%c0_17, %c0_18, %c129], %23 {strides = array<i32>} : memref<1x32x130xf32, #tpu.memory_space<vmem>>, vector<1x32x1xf32>,
    %c0_19 = arith.constant 0 : index
    %c0_20 = arith.constant 0 : index
    %c0_21 = arith.constant 0 : index
    %24 = vector.load %arg9[%c0_19, %c0_20, %c0_21] : memref<1x32x130xf32, #tpu.memory_space<vmem>>, vector<1x32x128xf32>
    %25 = vector.shape_cast %24 : vector<1x32x128xf32> to vector<32x128xf32>
    %c0_22 = arith.constant 0 : index
    %c0_23 = arith.constant 0 : index
    %c1_24 = arith.constant 1 : index
    %26 = vector.load %arg9[%c0_22, %c0_23, %c1_24] : memref<1x32x130xf32, #tpu.memory_space<vmem>>, vector<1x32x128xf32>
    %27 = vector.shape_cast %26 : vector<1x32x128xf32> to vector<32x128xf32>
    %c0_25 = arith.constant 0 : index
    %c0_26 = arith.constant 0 : index
    %c2 = arith.constant 2 : index
    %28 = vector.load %arg9[%c0_25, %c0_26, %c2] : memref<1x32x130xf32, #tpu.memory_space<vmem>>, vector<1x32x128xf32>
    %29 = vector.shape_cast %28 : vector<1x32x128xf32> to vector<32x128xf32>
    %30 = tpu.concatenate %25, %27, %29 in 0 : vector<32x128xf32>, vector<32x128xf32>, vector<32x128xf32> -> vector<96x128xf32>
    %c0_27 = arith.constant 0 : index
    %c0_28 = arith.constant 0 : index
    %31 = vector.load %arg4[%c0_27, %c0_28] : memref<32x96xf32, #tpu.memory_space<vmem>>, vector<32x96xf32>
    %cst_29 = arith.constant dense<0.000000e+00> : vector<32x128xf32>
    %32 = tpu.matmul %31, %30, %cst_29 {dimension_numbers = #tpu.dot_dimension_numbers<[1], [0], [0], [1], [0, 0, 1, 1], [], []>} : vector<32x96xf32>, vector<96x128xf32>, vector<32x128xf32> -> vector<32x128xf32>
    %c0_30 = arith.constant 0 : index
    %c0_31 = arith.constant 0 : index
    %33 = vector.load %arg5[%c0_30, %c0_31] : memref<32x1xf32, #tpu.memory_space<vmem>>, vector<32x1xf32>
    %34 = vector.broadcast %33 : vector<32x1xf32> to vector<32x128xf32>
    %35 = arith.addf %32, %34 : vector<32x128xf32>
    %cst_32 = arith.constant 2.000000e-01 : f32
    %36 = vector.broadcast %cst_32 : f32 to vector<32x128xf32>
    %37 = arith.mulf %36, %35 : vector<32x128xf32>
    %38 = arith.maximumf %35, %37 : vector<32x128xf32>
    %39 = tpu.concatenate %38, %1 in 0 : vector<32x128xf32>, vector<32x128xf32> -> vector<64x128xf32>
    %c0_33 = arith.constant 0 : index
    %c0_34 = arith.constant 0 : index
    %40 = vector.load %arg6[%c0_33, %c0_34] : memref<32x64xf32, #tpu.memory_space<vmem>>, vector<32x64xf32>
    %cst_35 = arith.constant dense<0.000000e+00> : vector<32x128xf32>
    %41 = tpu.matmul %40, %39, %cst_35 {dimension_numbers = #tpu.dot_dimension_numbers<[1], [0], [0], [1], [0, 0, 1, 1], [], []>} : vector<32x64xf32>, vector<64x128xf32>, vector<32x128xf32> -> vector<32x128xf32>
    %c0_36 = arith.constant 0 : index
    %c0_37 = arith.constant 0 : index
    %42 = vector.load %arg7[%c0_36, %c0_37] : memref<32x1xf32, #tpu.memory_space<vmem>>, vector<32x1xf32>
    %43 = vector.broadcast %42 : vector<32x1xf32> to vector<32x128xf32>
    %44 = arith.addf %41, %43 : vector<32x128xf32>
    %c0_38 = arith.constant 0 : index
    %c0_39 = arith.constant 0 : index
    %c0_40 = arith.constant 0 : index
    %45 = vector.load %arg8[%c0_38, %c0_39, %c0_40] : memref<1x32x128xf32, #tpu.memory_space<vmem>>, vector<1x32x128xf32>
    %46 = vector.shape_cast %45 : vector<1x32x128xf32> to vector<32x128xf32>
    %47 = vector.shape_cast %44 : vector<32x128xf32> to vector<1x32x128xf32>
    tpu.vector_store %arg8[%c0_38, %c0_39, %c0_40], %47 {strides = array<i32>} : memref<1x32x128xf32, #tpu.memory_space<vmem>>, vector<1x32x128xf32>,
    return
  }
  func.func @transform_0(%arg0: i32, %arg1: i32) -> (i32, i32, i32) {
    %c0_i32 = arith.constant 0 : i32
    %c0_i32_0 = arith.constant 0 : i32
    return %arg0, %c0_i32, %arg1 : i32, i32, i32
  }
  func.func @transform_1(%arg0: i32, %arg1: i32) -> (i32, i32, i32, i32) {
    %c0_i32 = arith.constant 0 : i32
    %c0_i32_0 = arith.constant 0 : i32
    %c0_i32_1 = arith.constant 0 : i32
    return %arg0, %arg1, %c0_i32, %c0_i32_0 : i32, i32, i32, i32
  }
  func.func @transform_2(%arg0: i32, %arg1: i32) -> (i32, i32) {
    %c0_i32 = arith.constant 0 : i32
    %c0_i32_0 = arith.constant 0 : i32
    %c0_i32_1 = arith.constant 0 : i32
    return %c0_i32, %c0_i32_0 : i32, i32
  }
  func.func @transform_3(%arg0: i32, %arg1: i32) -> (i32, i32) {
    %c0_i32 = arith.constant 0 : i32
    %c0_i32_0 = arith.constant 0 : i32
    %c0_i32_1 = arith.constant 0 : i32
    return %c0_i32, %c0_i32_0 : i32, i32
  }
  func.func @transform_4(%arg0: i32, %arg1: i32) -> (i32, i32) {
    %c0_i32 = arith.constant 0 : i32
    %c0_i32_0 = arith.constant 0 : i32
    %c0_i32_1 = arith.constant 0 : i32
    return %c0_i32, %c0_i32_0 : i32, i32
  }
  func.func @transform_5(%arg0: i32, %arg1: i32) -> (i32, i32) {
    %c0_i32 = arith.constant 0 : i32
    %c0_i32_0 = arith.constant 0 : i32
    %c0_i32_1 = arith.constant 0 : i32
    return %c0_i32, %c0_i32_0 : i32, i32
  }
  func.func @transform_6(%arg0: i32, %arg1: i32) -> (i32, i32, i32) {
    %c0_i32 = arith.constant 0 : i32
    %c0_i32_0 = arith.constant 0 : i32
    return %arg0, %c0_i32, %arg1 : i32, i32, i32
  }
}

</mosaic_0001>

<llo_original>
// kernel: tpu_custom_call.1
$region0: #{tpu_custom_call.1}
  #allocation0 [shape = 'u32[]', space=smem, size = 0x4, offset = 0x4, fixed_abs, tag = 'smem constant byte address 0x4 - core index']
  #allocation1 [shape = 'u32[144,128]{1,0:T(1,128)}', space=vmem, size = 0x12000, scoped, tag = 'internal scratch']
  #allocation2 [shape = 'f32[1,32,130]{2,1,0:T(8,128)}', space=vmem, size = 0x8000, scoped, tag = 'scratch operand']
  %s0 = inlined_call_operand.vmem [shape: f32[2,32,128], index: 0, kind: input, shape index: {}]
  %s1 = inlined_call_operand.vmem [shape: f32[2,1,32,2], index: 1, kind: input, shape index: {}]
  %s2 = inlined_call_operand.vmem [shape: f32[32,96], index: 2, kind: input, shape index: {}]
  %s3 = inlined_call_operand.vmem [shape: f32[32,1], index: 3, kind: input, shape index: {}]
  %s4 = inlined_call_operand.vmem [shape: f32[32,64], index: 4, kind: input, shape index: {}]
  %s5 = inlined_call_operand.vmem [shape: f32[32,1], index: 5, kind: input, shape index: {}]
  %s6 = inlined_call_operand.hbm [shape: f32[2,32,128], index: 6, kind: output, shape index: {}]
  %s7 = sld [smem:[#allocation0]]
  $region57: #{tpu_custom_call.1} parent=0
    _
  %s9 = ssub.s32 1, %s7
  %s10 = scalar_select 0, %s9, %s7
  $region1: #{tpu_custom_call.1} parent=0
    #allocation3 [shape = 'u8[32768]{0}', space=vmem, size = 0x8000, scoped, tag = 'output window, operand 0']
    #allocation4 [shape = 's32[2]{0}', space=sflag, size = 0x8, scoped, tag = 'scoped memory for tpu_custom_call.1']
    %11 = vsyncpa [#allocation4], 0
    %s12 = scalar_lea.sflag [#allocation4], 1
    %13 = vsyncpa %s12, 0
    loop: start=0, step=1, limit=4
    $region2: #{tpu_custom_call.1} parent=1 // loop_pre_header
      _
    $region3: #{tpu_custom_call.1} parent=1 // loop_header
      %s15 = sphi 0, %s19
      %p16 = scmp.ge.s32.totalorder %s15, 4
      %s22 = sphi 0, %s34
      %s23 = sphi 0, %s30
      %s24 = sphi 0, %s22
      %s25 = sphi 0, %s23
      %s26 = sphi 0, %s24
      %s27 = sphi 0, %s25
      %s39 = sphi 0, %s41
      %s42 = sphi 0, %s39
      %s43 = sphi 0, %s42
      %s59 = sphi 0, %s43
      %s67 = sphi 0, %s69
      %s70 = sphi 0, %s67
      %s71 = sphi 0, %s70
      %s87 = sphi 0, %s71
      %s91 = sphi 0, %s91
      %s93 = sphi 0, %s91
      %s94 = sphi 0, %s93
      %s108 = sphi 0, %s94
      %s112 = sphi 0, %s112
      %s114 = sphi 0, %s112
      %s115 = sphi 0, %s114
      %s129 = sphi 0, %s115
      %s133 = sphi 0, %s133
      %s135 = sphi 0, %s133
      %s136 = sphi 0, %s135
      %s150 = sphi 0, %s136
      %s154 = sphi 0, %s154
      %s156 = sphi 0, %s154
      %s157 = sphi 0, %s156
      %s171 = sphi 0, %s157
      %s179 = sphi 0, %s181
      %s182 = sphi 0, %s179
      %s183 = sphi 0, %s182
      %s199 = sphi 0, %s183
    $region4: #{tpu_custom_call.1} parent=1 // loop_header_branch
      %18 = sbr.rel (%p16) target = $region8
    $region5: #{tpu_custom_call.1} parent=1 // loop_body
      %s20 = ssub.s32 %s15, 1
      %s21 = ssub.s32 %s15, 2
      %s28 = sadd.s32 1, %s23
      %p29 = scmp.ge.s32.totalorder %s28, 1
      %s30 = scalar_select %p29, 0, %s28
      %s31 = sadd.s32 1, %s22
      %s32 = scalar_select %p29, %s31, %s22
      %p33 = scmp.ge.s32.totalorder %s32, 2
      %s34 = scalar_select %p33, 0, %s32
      %s35 = ssub.s32 %s22, %s34
      %s36 = ssub.s32 %s23, %s30
      %s37 = sor.u32 %s35, %s36
      %p38 = scmp.eq.s32.totalorder %s37, 0
      %s40 = sadd.s32 %s39, 1
      %s41 = scalar_select %p38, %s39, %s40
      %p44 = pneg %p38
      %p45 = scmp.eq.s32.totalorder %s15, 1
      %p46 = por %p44, %p45
      %p47 = scmp.ne.s32.totalorder %s39, %s42
      %p48 = scmp.eq.s32.totalorder %s15, 0
      %p49 = por %p47, %p48
      %p50 = scmp.ne.s32.totalorder %s39, %s42
      %p51 = scmp.eq.s32.totalorder %s20, 1
      %p52 = por %p50, %p51
      %p53 = scmp.ne.s32.totalorder %s42, %s43
      %p54 = scmp.eq.s32.totalorder %s20, 0
      %p55 = por %p53, %p54
      %p56 = scmp.ne.s32.totalorder %s42, %s43
      %p57 = scmp.eq.s32.totalorder %s21, 1
      %p58 = por %p56, %p57
      %p60 = scmp.ne.s32.totalorder %s43, %s59
      %p61 = scmp.eq.s32.totalorder %s21, 0
      %p62 = por %p60, %p61
      %s63 = ssub.s32 %s22, %s34
      %s64 = ssub.s32 %s23, %s30
      %s65 = sor.u32 %s63, %s64
      %p66 = scmp.eq.s32.totalorder %s65, 0
      %s68 = sadd.s32 %s67, 1
      %s69 = scalar_select %p66, %s67, %s68
      %p72 = pneg %p66
      %p73 = scmp.eq.s32.totalorder %s15, 1
      %p74 = por %p72, %p73
      %p75 = scmp.ne.s32.totalorder %s67, %s70
      %p76 = scmp.eq.s32.totalorder %s15, 0
      %p77 = por %p75, %p76
      %p78 = scmp.ne.s32.totalorder %s67, %s70
      %p79 = scmp.eq.s32.totalorder %s20, 1
      %p80 = por %p78, %p79
      %p81 = scmp.ne.s32.totalorder %s70, %s71
      %p82 = scmp.eq.s32.totalorder %s20, 0
      %p83 = por %p81, %p82
      %p84 = scmp.ne.s32.totalorder %s70, %s71
      %p85 = scmp.eq.s32.totalorder %s21, 1
      %p86 = por %p84, %p85
      %p88 = scmp.ne.s32.totalorder %s71, %s87
      %p89 = scmp.eq.s32.totalorder %s21, 0
      %p90 = por %p88, %p89
      %s92 = sadd.s32 %s91, 1
      %p95 = scmp.eq.s32.totalorder %s15, 1
      %p96 = scmp.ne.s32.totalorder %s91, %s93
      %p97 = scmp.eq.s32.totalorder %s15, 0
      %p98 = por %p96, %p97
      %p99 = scmp.ne.s32.totalorder %s91, %s93
      %p100 = scmp.eq.s32.totalorder %s20, 1
      %p101 = por %p99, %p100
      %p102 = scmp.ne.s32.totalorder %s93, %s94
      %p103 = scmp.eq.s32.totalorder %s20, 0
      %p104 = por %p102, %p103
      %p105 = scmp.ne.s32.totalorder %s93, %s94
      %p106 = scmp.eq.s32.totalorder %s21, 1
      %p107 = por %p105, %p106
      %p109 = scmp.ne.s32.totalorder %s94, %s108
      %p110 = scmp.eq.s32.totalorder %s21, 0
      %p111 = por %p109, %p110
      %s113 = sadd.s32 %s112, 1
      %p116 = scmp.eq.s32.totalorder %s15, 1
      %p117 = scmp.ne.s32.totalorder %s112, %s114
      %p118 = scmp.eq.s32.totalorder %s15, 0
      %p119 = por %p117, %p118
      %p120 = scmp.ne.s32.totalorder %s112, %s114
      %p121 = scmp.eq.s32.totalorder %s20, 1
      %p122 = por %p120, %p121
      %p123 = scmp.ne.s32.totalorder %s114, %s115
      %p124 = scmp.eq.s32.totalorder %s20, 0
      %p125 = por %p123, %p124
      %p126 = scmp.ne.s32.totalorder %s114, %s115
      %p127 = scmp.eq.s32.totalorder %s21, 1
      %p128 = por %p126, %p127
      %p130 = scmp.ne.s32.totalorder %s115, %s129
      %p131 = scmp.eq.s32.totalorder %s21, 0
      %p132 = por %p130, %p131
      %s134 = sadd.s32 %s133, 1
      %p137 = scmp.eq.s32.totalorder %s15, 1
      %p138 = scmp.ne.s32.totalorder %s133, %s135
      %p139 = scmp.eq.s32.totalorder %s15, 0
      %p140 = por %p138, %p139
      %p141 = scmp.ne.s32.totalorder %s133, %s135
      %p142 = scmp.eq.s32.totalorder %s20, 1
      %p143 = por %p141, %p142
      %p144 = scmp.ne.s32.totalorder %s135, %s136
      %p145 = scmp.eq.s32.totalorder %s20, 0
      %p146 = por %p144, %p145
      %p147 = scmp.ne.s32.totalorder %s135, %s136
      %p148 = scmp.eq.s32.totalorder %s21, 1
      %p149 = por %p147, %p148
      %p151 = scmp.ne.s32.totalorder %s136, %s150
      %p152 = scmp.eq.s32.totalorder %s21, 0
      %p153 = por %p151, %p152
      %s155 = sadd.s32 %s154, 1
      %p158 = scmp.eq.s32.totalorder %s15, 1
      %p159 = scmp.ne.s32.totalorder %s154, %s156
      %p160 = scmp.eq.s32.totalorder %s15, 0
      %p161 = por %p159, %p160
      %p162 = scmp.ne.s32.totalorder %s154, %s156
      %p163 = scmp.eq.s32.totalorder %s20, 1
      %p164 = por %p162, %p163
      %p165 = scmp.ne.s32.totalorder %s156, %s157
      %p166 = scmp.eq.s32.totalorder %s20, 0
      %p167 = por %p165, %p166
      %p168 = scmp.ne.s32.totalorder %s156, %s157
      %p169 = scmp.eq.s32.totalorder %s21, 1
      %p170 = por %p168, %p169
      %p172 = scmp.ne.s32.totalorder %s157, %s171
      %p173 = scmp.eq.s32.totalorder %s21, 0
      %p174 = por %p172, %p173
      %s175 = ssub.s32 %s22, %s34
      %s176 = ssub.s32 %s23, %s30
      %s177 = sor.u32 %s175, %s176
      %p178 = scmp.eq.s32.totalorder %s177, 0
      %s180 = sadd.s32 %s179, 1
      %s181 = scalar_select %p178, %s179, %s180
      %p184 = pneg %p178
      %p185 = scmp.eq.s32.totalorder %s15, 1
      %p186 = por %p184, %p185
      %p187 = scmp.ne.s32.totalorder %s179, %s182
      %p188 = scmp.eq.s32.totalorder %s15, 0
      %p189 = por %p187, %p188
      %p190 = scmp.ne.s32.totalorder %s179, %s182
      %p191 = scmp.eq.s32.totalorder %s20, 1
      %p192 = por %p190, %p191
      %p193 = scmp.ne.s32.totalorder %s182, %s183
      %p194 = scmp.eq.s32.totalorder %s20, 0
      %p195 = por %p193, %p194
      %p196 = scmp.ne.s32.totalorder %s182, %s183
      %p197 = scmp.eq.s32.totalorder %s21, 1
      %p198 = por %p196, %p197
      %p200 = scmp.ne.s32.totalorder %s183, %s199
      %p201 = scmp.eq.s32.totalorder %s21, 0
      %p202 = por %p200, %p201
      %p203 = scmp.le.s32.totalorder 1, %s15
      %p204 = scmp.lt.s32.totalorder %s15, 3
      %p205 = pnand %p203, %p204
      %p206 = pneg %p205
      // Predicated region
      $region9: #{tpu_custom_call.1} parent=5 // pred_check
        _
      $region10: #{tpu_custom_call.1} parent=5 // pred_check_branch
        %208 = sbr.rel (%p205) target = $region12
      $region11: #{tpu_custom_call.1} parent=5 // pred_region
        %s209 = ssub.s32 %s15, 1
        // Predicated region
        $region13: #{tpu_custom_call.1} parent=11 // pred_check
          %p210 = pneg %p104
        $region14: #{tpu_custom_call.1} parent=11 // pred_check_branch
          %212 = sbr.rel (%p210) target = $region16
        $region15: #{tpu_custom_call.1} parent=11 // pred_region
          _
        $region16: #{tpu_custom_call.1} parent=11 // pred_fallthru
          _
        // Predicated region
        $region17: #{tpu_custom_call.1} parent=11 // pred_check
          %p213 = pneg %p125
        $region18: #{tpu_custom_call.1} parent=11 // pred_check_branch
          %215 = sbr.rel (%p213) target = $region20
        $region19: #{tpu_custom_call.1} parent=11 // pred_region
          _
        $region20: #{tpu_custom_call.1} parent=11 // pred_fallthru
          _
        // Predicated region
        $region21: #{tpu_custom_call.1} parent=11 // pred_check
          %p216 = pneg %p146
        $region22: #{tpu_custom_call.1} parent=11 // pred_check_branch
          %218 = sbr.rel (%p216) target = $region24
        $region23: #{tpu_custom_call.1} parent=11 // pred_region
          _
        $region24: #{tpu_custom_call.1} parent=11 // pred_fallthru
          _
        // Predicated region
        $region25: #{tpu_custom_call.1} parent=11 // pred_check
          %p219 = pneg %p167
        $region26: #{tpu_custom_call.1} parent=11 // pred_check_branch
          %221 = sbr.rel (%p219) target = $region28
        $region27: #{tpu_custom_call.1} parent=11 // pred_region
          _
        $region28: #{tpu_custom_call.1} parent=11 // pred_fallthru
          _
      $region12: #{tpu_custom_call.1} parent=5 // pred_fallthru
        _
      %p222 = scmp.lt.s32.totalorder %s15, 2
      // Predicated region
      $region29: #{tpu_custom_call.1} parent=5 // pred_check
        %p223 = pneg %p222
      $region30: #{tpu_custom_call.1} parent=5 // pred_check_branch
        %225 = sbr.rel (%p223) target = $region32
      $region31: #{tpu_custom_call.1} parent=5 // pred_region
        // Predicated region
        $region33: #{tpu_custom_call.1} parent=31 // pred_check
          %p226 = pneg %p49
        $region34: #{tpu_custom_call.1} parent=31 // pred_check_branch
          %228 = sbr.rel (%p226) target = $region36
        $region35: #{tpu_custom_call.1} parent=31 // pred_region
          %p229 = scmp.lt.s32.totalorder %s22, 1
          %s230 = scalar_select %p229, %s22, 1
          %p231 = scmp.lt.s32.totalorder %s23, 0
          %s232 = scalar_select %p231, %s23, 0
          %s233 = smul.addr %s230, 4
          %s234 = sadd.s32 %s232, %s233
          %s235 = smul.addr %s234, 8
          %s236 = scalar_lea.vmem %s0, %s235
        $region36: #{tpu_custom_call.1} parent=31 // pred_fallthru
          _
        // Predicated region
        $region37: #{tpu_custom_call.1} parent=31 // pred_check
          %p237 = pneg %p77
        $region38: #{tpu_custom_call.1} parent=31 // pred_check_branch
          %239 = sbr.rel (%p237) target = $region40
        $region39: #{tpu_custom_call.1} parent=31 // pred_region
          %p240 = scmp.lt.s32.totalorder %s22, 1
          %s241 = scalar_select %p240, %s22, 1
          %p242 = scmp.lt.s32.totalorder %s23, 0
          %s243 = scalar_select %p242, %s23, 0
          %s244 = smul.addr %s243, 4
          %s245 = smul.addr %s241, 4
          %s246 = sadd.s32 %s244, %s245
          %s247 = smul.addr %s246, 8
          %s248 = scalar_lea.vmem %s1, %s247
        $region40: #{tpu_custom_call.1} parent=31 // pred_fallthru
          _
      $region32: #{tpu_custom_call.1} parent=5 // pred_fallthru
        _
      %p249 = scmp.le.s32.totalorder 1, %s15
      %p250 = scmp.lt.s32.totalorder %s15, 3
      %p251 = pnand %p249, %p250
      %p252 = pneg %p251
      // Predicated region
      $region41: #{tpu_custom_call.1} parent=5 // pred_check
        _
      $region42: #{tpu_custom_call.1} parent=5 // pred_check_branch
        %254 = sbr.rel (%p251) target = $region44
      $region43: #{tpu_custom_call.1} parent=5 // pred_region
        %s255 = ssub.s32 %s15, 1
        %p256 = scmp.lt.s32.totalorder %s24, 1
        %s257 = scalar_select %p256, %s24, 1
        %p258 = scmp.lt.s32.totalorder %s25, 0
        %s259 = scalar_select %p258, %s25, 0
        %s260 = smul.addr %s257, 4
        %s261 = sadd.s32 %s259, %s260
        %s262 = smul.addr %s261, 8
        %s263 = scalar_lea.vmem %s0, %s262
        %p264 = pneg %p55
        %p265 = pneg %p52
        %p266 = scmp.lt.s32.totalorder %s24, 1
        %s267 = scalar_select %p266, %s24, 1
        %p268 = scmp.lt.s32.totalorder %s25, 0
        %s269 = scalar_select %p268, %s25, 0
        %s270 = smul.addr %s269, 4
        %s271 = smul.addr %s267, 4
        %s272 = sadd.s32 %s270, %s271
        %s273 = smul.addr %s272, 8
        %s274 = scalar_lea.vmem %s1, %s273
        %p275 = pneg %p83
        %p276 = pneg %p80
        %p277 = pneg %p104
        %p278 = pneg %p101
        %p279 = pneg %p125
        %p280 = pneg %p122
        %p281 = pneg %p146
        %p282 = pneg %p143
        %p283 = pneg %p167
        %p284 = pneg %p164
        %p285 = pneg %p195
        %p286 = pneg %p192
        %s287 = sand.u32 %s182, 1
        %s288 = scalar_lea.sflag [#allocation4], %s287
        %s289 = sand.u32 %s182, 1
        %s290 = smul.addr %s289, 32
        %s291 = scalar_lea.vmem [#allocation3], %s290
        %p292 = scmp.lt.s32.totalorder %s24, 1
        %s293 = scalar_select %p292, %s24, 1
        %p294 = scmp.lt.s32.totalorder %s25, 0
        %s295 = scalar_select %p294, %s25, 0
        %s296 = smul.addr %s293, 4
        %s297 = sadd.s32 %s295, %s296
        %s298 = smul.addr %s297, 8
        %s299 = scalar_lea.vmem %s0, %s298
        %p300 = scmp.lt.s32.totalorder %s24, 1
        %s301 = scalar_select %p300, %s24, 1
        %p302 = scmp.lt.s32.totalorder %s25, 0
        %s303 = scalar_select %p302, %s25, 0
        %s304 = smul.addr %s303, 4
        %s305 = smul.addr %s301, 4
        %s306 = sadd.s32 %s304, %s305
        %s307 = smul.addr %s306, 8
        %s308 = scalar_lea.vmem %s1, %s307
        %v309 = vld [vmem:[%s299] sm:$0xff]
        %v310 = vld [vmem:[%s299 + $0x8] sm:$0xff]
        %v311 = vld [vmem:[%s299 + $0x10] sm:$0xff]
        %v312 = vld [vmem:[%s299 + $0x18] sm:$0xff]
        %v313 = vmul.f32 %v309, 0.2
        %v314 = vmul.f32 %v310, 0.2
        %v315 = vmul.f32 %v311, 0.2
        %v316 = vmul.f32 %v312, 0.2
        %v317 = vmax.f32 %v309, %v313
        %v318 = vmax.f32 %v310, %v314
        %v319 = vmax.f32 %v311, %v315
        %v320 = vmax.f32 %v312, %v316
        %325 = vrot.lane.b32.xlu0 %v317, 1
        %v326 = vpop.permute.xlu0 %325
        %327 = vrot.lane.b32.xlu0 %v318, 1
        %v328 = vpop.permute.xlu0 %327
        %329 = vrot.lane.b32.xlu0 %v319, 1
        %v330 = vpop.permute.xlu0 %329
        %331 = vrot.lane.b32.xlu0 %v320, 1
        %v332 = vpop.permute.xlu0 %331
        %vm337 = vcmask 1047560
        %338 = vst.msk [vmem:[#allocation2] sm:$0xff] %vm337, %v326
        %vm339 = vcmask 7168
        %340 = vst.msk [vmem:[#allocation2 + $0x8] sm:$0xff] %vm339, %v326
        %341 = vst.msk [vmem:[#allocation2 + $0x10] sm:$0xff] %vm337, %v328
        %342 = vst.msk [vmem:[#allocation2 + $0x18] sm:$0xff] %vm339, %v328
        %343 = vst.msk [vmem:[#allocation2 + $0x20] sm:$0xff] %vm337, %v330
        %344 = vst.msk [vmem:[#allocation2 + $0x28] sm:$0xff] %vm339, %v330
        %345 = vst.msk [vmem:[#allocation2 + $0x30] sm:$0xff] %vm337, %v332
        %346 = vst.msk [vmem:[#allocation2 + $0x38] sm:$0xff] %vm339, %v332
        %v347 = vld [vmem:[%s308] sm:$0xff]
        %v348 = vld [vmem:[%s308 + $0x8] sm:$0xff]
        %v349 = vld [vmem:[%s308 + $0x10] sm:$0xff]
        %v350 = vld [vmem:[%s308 + $0x18] sm:$0xff]
        %v351 = vmul.f32 %v347, 0.2
        %v352 = vmul.f32 %v348, 0.2
        %v353 = vmul.f32 %v349, 0.2
        %v354 = vmul.f32 %v350, 0.2
        %v355 = vmax.f32 %v347, %v351
        %v356 = vmax.f32 %v348, %v352
        %v357 = vmax.f32 %v349, %v353
        %v358 = vmax.f32 %v350, %v354
        %359 = vst.msk [vmem:[#allocation2] sm:$0xff] %vm339, %v355
        %360 = vst.msk [vmem:[#allocation2 + $0x10] sm:$0xff] %vm339, %v356
        %361 = vst.msk [vmem:[#allocation2 + $0x20] sm:$0xff] %vm339, %v357
        %362 = vst.msk [vmem:[#allocation2 + $0x30] sm:$0xff] %vm339, %v358
        %v363 = vld [vmem:[%s308] sm:$0xff]
        %v364 = vld [vmem:[%s308 + $0x8] sm:$0xff]
        %v365 = vld [vmem:[%s308 + $0x10] sm:$0xff]
        %v366 = vld [vmem:[%s308 + $0x18] sm:$0xff]
        %v367 = vmul.f32 %v363, 0.2
        %v368 = vmul.f32 %v364, 0.2
        %v369 = vmul.f32 %v365, 0.2
        %v370 = vmul.f32 %v366, 0.2
        %v371 = vmax.f32 %v363, %v367
        %v372 = vmax.f32 %v364, %v368
        %v373 = vmax.f32 %v365, %v369
        %v374 = vmax.f32 %v366, %v370
        %vm375 = vcmask 15368
        %376 = vst.msk [vmem:[#allocation2 + $0x8] sm:$0xff] %vm375, %v371
        %377 = vst.msk [vmem:[#allocation2 + $0x18] sm:$0xff] %vm375, %v372
        %378 = vst.msk [vmem:[#allocation2 + $0x28] sm:$0xff] %vm375, %v373
        %379 = vst.msk [vmem:[#allocation2 + $0x38] sm:$0xff] %vm375, %v374
        %v380 = vld [vmem:[#allocation2] sm:$0xff]
        %v381 = vld [vmem:[#allocation2 + $0x10] sm:$0xff]
        %v382 = vld [vmem:[#allocation2 + $0x20] sm:$0xff]
        %v383 = vld [vmem:[#allocation2 + $0x30] sm:$0xff]
        %v384 = vld [vmem:[#allocation2 + $0x8] sm:$0xff]
        %v385 = vld [vmem:[#allocation2 + $0x18] sm:$0xff]
        %v386 = vld [vmem:[#allocation2 + $0x28] sm:$0xff]
        %v387 = vld [vmem:[#allocation2 + $0x38] sm:$0xff]
        %396 = vrot.lane.b32.xlu0 %v380, 127
        %v397 = vpop.permute.xlu0 %396
        %398 = vrot.lane.b32.xlu0 %v384, 127
        %v399 = vpop.permute.xlu0 %398
        %400 = vrot.lane.b32.xlu0 %v381, 127
        %v401 = vpop.permute.xlu0 %400
        %402 = vrot.lane.b32.xlu0 %v385, 127
        %v403 = vpop.permute.xlu0 %402
        %404 = vrot.lane.b32.xlu0 %v382, 127
        %v405 = vpop.permute.xlu0 %404
        %406 = vrot.lane.b32.xlu0 %v386, 127
        %v407 = vpop.permute.xlu0 %406
        %408 = vrot.lane.b32.xlu0 %v383, 127
        %v409 = vpop.permute.xlu0 %408
        %410 = vrot.lane.b32.xlu0 %v387, 127
        %v411 = vpop.permute.xlu0 %410
        %vm412 = vcmask 1039360
        %v413 = vsel %vm412, %v397, %v399
        %v414 = vsel %vm412, %v401, %v403
        %v415 = vsel %vm412, %v405, %v407
        %v416 = vsel %vm412, %v409, %v411
        %421 = vrot.lane.b32.xlu0 %v380, 126
        %v422 = vpop.permute.xlu0 %421
        %423 = vrot.lane.b32.xlu0 %v384, 126
        %v424 = vpop.permute.xlu0 %423
        %425 = vrot.lane.b32.xlu0 %v381, 126
        %v426 = vpop.permute.xlu0 %425
        %427 = vrot.lane.b32.xlu0 %v385, 126
        %v428 = vpop.permute.xlu0 %427
        %429 = vrot.lane.b32.xlu0 %v382, 126
        %v430 = vpop.permute.xlu0 %429
        %431 = vrot.lane.b32.xlu0 %v386, 126
        %v432 = vpop.permute.xlu0 %431
        %433 = vrot.lane.b32.xlu0 %v383, 126
        %v434 = vpop.permute.xlu0 %433
        %435 = vrot.lane.b32.xlu0 %v387, 126
        %v436 = vpop.permute.xlu0 %435
        %vm437 = vcmask 1031168
        %v438 = vsel %vm437, %v422, %v424
        %v439 = vsel %vm437, %v426, %v428
        %v440 = vsel %vm437, %v430, %v432
        %v441 = vsel %vm437, %v434, %v436
        %v446 = vld [vmem:[%s2] sm:$0xff]
        %v447 = vld [vmem:[%s2 + $0x8] sm:$0xff]
        %v448 = vld [vmem:[%s2 + $0x10] sm:$0xff]
        %v449 = vld [vmem:[%s2 + $0x18] sm:$0xff]
        %v450 = vld [vmem:[%s3] sm:$0xff]
        %v451 = vld [vmem:[%s3 + $0x8] sm:$0xff]
        %v452 = vld [vmem:[%s3 + $0x10] sm:$0xff]
        %v453 = vld [vmem:[%s3 + $0x18] sm:$0xff]
        %455 = vset.pattern.permute.xlu0 0
        %456 = vperm.xlu0 %455, %v450
        %v457 = vpop.permute.xlu0 %456
        %460 = vset.pattern.permute.xlu0 0
        %461 = vperm.xlu0 %460, %v451
        %v462 = vpop.permute.xlu0 %461
        %465 = vset.pattern.permute.xlu0 0
        %466 = vperm.xlu0 %465, %v452
        %v467 = vpop.permute.xlu0 %466
        %470 = vset.pattern.permute.xlu0 0
        %471 = vperm.xlu0 %470, %v453
        %v472 = vpop.permute.xlu0 %471
        %vm474 = vcmask 785408
        %v476 = vsel %vm474, %v446, 0
        %v479 = vsel %vm474, %v447, 0
        %v482 = vsel %vm474, %v448, 0
        %v485 = vsel %vm474, %v449, 0
        %487 = vmatprep.subr.mxu0 0.0
        %488 = vmatpush1.msra.mxu0 %v380
        %489 = vmatprep.subr.mxu0 0.0
        %490 = vmatpush1.msra.mxu0 %v381
        %491 = vmatprep.subr.mxu0 0.0
        %492 = vmatpush1.msra.mxu0 %v382
        %493 = vmatprep.subr.mxu0 0.0
        %494 = vmatpush1.msra.mxu0 %v383
        %495 = vmatprep.subr.mxu0 0.0
        %496 = vmatpush1.msra.mxu0 %v413
        %497 = vmatprep.subr.mxu0 0.0
        %498 = vmatpush1.msra.mxu0 %v414
        %499 = vmatprep.subr.mxu0 0.0
        %500 = vmatpush1.msra.mxu0 %v415
        %501 = vmatprep.subr.mxu0 0.0
        %502 = vmatpush1.msra.mxu0 %v416
        %503 = vmatprep.subr.mxu0 0.0
        %504 = vmatpush1.msra.mxu0 %v438
        %505 = vmatprep.subr.mxu0 0.0
        %506 = vmatpush1.msra.mxu0 %v439
        %507 = vmatprep.subr.mxu0 0.0
        %508 = vmatpush1.msra.mxu0 %v440
        %509 = vmatprep.subr.mxu0 0.0
        %510 = vmatpush1.msra.mxu0 %v441
        %511 = vmatprep.subr.mxu0 0.0
        %512 = vmatpush1.msra.mxu0 0.0
        %513 = vmatprep.subr.mxu0 0.0
        %514 = vmatpush1.msra.mxu0 0.0
        %515 = vmatprep.subr.mxu0 0.0
        %516 = vmatpush1.msra.mxu0 0.0
        %517 = vmatprep.subr.mxu0 0.0
        %518 = vmatpush1.msra.mxu0 0.0
        %519 = vmatprep.subr.mxu0 0.0
        %520 = vmatpush1.msra.mxu0 0.0
        %521 = vmatprep.subr.mxu0 0.0
        %522 = vmatpush1.msra.mxu0 0.0
        %523 = vmatprep.subr.mxu0 0.0
        %524 = vmatpush1.msra.mxu0 0.0
        %525 = vmatprep.subr.mxu0 0.0
        %526 = vmatpush1.msra.mxu0 0.0
        %527 = vmatprep.subr.mxu0 0.0
        %528 = vmatpush1.msra.mxu0 0.0
        %529 = vmatprep.subr.mxu0 0.0
        %530 = vmatpush1.msra.mxu0 0.0
        %531 = vmatprep.subr.mxu0 0.0
        %532 = vmatpush1.msra.mxu0 0.0
        %533 = vmatprep.subr.mxu0 0.0
        %534 = vmatpush1.msra.mxu0 0.0
        %535 = vmatprep.subr.mxu0 0.0
        %536 = vmatpush1.msra.mxu0 0.0
        %537 = vmatprep.subr.mxu0 0.0
        %538 = vmatpush1.msra.mxu0 0.0
        %539 = vmatprep.subr.mxu0 0.0
        %540 = vmatpush1.msra.mxu0 0.0
        %541 = vmatprep.subr.mxu0 0.0
        %542 = vmatpush1.msra.mxu0 0.0
        %543 = vmatprep.subr.mxu0 0.0
        %544 = vmatpush1.msra.mxu0 0.0
        %545 = vmatprep.subr.mxu0 0.0
        %546 = vmatpush1.msra.mxu0 0.0
        %547 = vmatprep.subr.mxu0 0.0
        %548 = vmatpush1.msra.mxu0 0.0
        %549 = vmatprep.subr.mxu0 0.0
        %550 = vmatpush1.msra.mxu0 0.0
        %551 = vmatprep.mubr.f32.mxu0 0.0
        %552 = vmatmul.mubr.f32.gmra.mrb[0].mxu0 %v476
        %v553 = vpop.f32.mrb[0].mxu0
        %v554 = vadd.f32 %v457, %v553
        %v555 = vpop.f32.mrb[0].mxu0
        %556 = vmatprep.mubr.f32.mxu0 0.0
        %557 = vmatmul.mubr.f32.gmra.mrb[0].mxu0 %v479
        %v558 = vpop.f32.mrb[0].mxu0
        %v559 = vadd.f32 %v462, %v558
        %v560 = vpop.f32.mrb[0].mxu0
        %561 = vmatprep.mubr.f32.mxu0 0.0
        %562 = vmatmul.mubr.f32.gmra.mrb[0].mxu0 %v482
        %v563 = vpop.f32.mrb[0].mxu0
        %v564 = vadd.f32 %v467, %v563
        %v565 = vpop.f32.mrb[0].mxu0
        %566 = vmatprep.mubr.f32.mxu0 0.0
        %567 = vmatmul.mubr.f32.gmra.mrb[0].mxu0 %v485
        %v568 = vpop.f32.mrb[0].mxu0
        %v569 = vadd.f32 %v472, %v568
        %v570 = vpop.f32.mrb[0].mxu0
        %571 = vdwg.mxu0
        %v572 = vmul.f32 %v554, 0.2
        %v573 = vmul.f32 %v559, 0.2
        %v574 = vmul.f32 %v564, 0.2
        %v575 = vmul.f32 %v569, 0.2
        %v576 = vmax.f32 %v554, %v572
        %v577 = vmax.f32 %v559, %v573
        %v578 = vmax.f32 %v564, %v574
        %v579 = vmax.f32 %v569, %v575
        %v580 = vld [vmem:[%s4] sm:$0xff]
        %v581 = vld [vmem:[%s4 + $0x8] sm:$0xff]
        %v582 = vld [vmem:[%s4 + $0x10] sm:$0xff]
        %v583 = vld [vmem:[%s4 + $0x18] sm:$0xff]
        %v584 = vld [vmem:[%s5] sm:$0xff]
        %v585 = vld [vmem:[%s5 + $0x8] sm:$0xff]
        %v586 = vld [vmem:[%s5 + $0x10] sm:$0xff]
        %v587 = vld [vmem:[%s5 + $0x18] sm:$0xff]
        %589 = vset.pattern.permute.xlu0 0
        %590 = vperm.xlu0 %589, %v584
        %v591 = vpop.permute.xlu0 %590
        %594 = vset.pattern.permute.xlu0 0
        %595 = vperm.xlu0 %594, %v585
        %v596 = vpop.permute.xlu0 %595
        %599 = vset.pattern.permute.xlu0 0
        %600 = vperm.xlu0 %599, %v586
        %v601 = vpop.permute.xlu0 %600
        %604 = vset.pattern.permute.xlu0 0
        %605 = vperm.xlu0 %604, %v587
        %v606 = vpop.permute.xlu0 %605
        %vm608 = vcmask 523264
        %v610 = vsel %vm608, %v580, 0
        %v613 = vsel %vm608, %v581, 0
        %v616 = vsel %vm608, %v582, 0
        %v619 = vsel %vm608, %v583, 0
        %621 = vmatprep.subr.mxu0 0.0
        %622 = vmatpush1.msra.mxu0 %v576
        %623 = vmatprep.subr.mxu0 0.0
        %624 = vmatpush1.msra.mxu0 %v577
        %625 = vmatprep.subr.mxu0 0.0
        %626 = vmatpush1.msra.mxu0 %v578
        %627 = vmatprep.subr.mxu0 0.0
        %628 = vmatpush1.msra.mxu0 %v579
        %629 = vmatprep.subr.mxu0 0.0
        %630 = vmatpush1.msra.mxu0 %v309
        %631 = vmatprep.subr.mxu0 0.0
        %632 = vmatpush1.msra.mxu0 %v310
        %633 = vmatprep.subr.mxu0 0.0
        %634 = vmatpush1.msra.mxu0 %v311
        %635 = vmatprep.subr.mxu0 0.0
        %636 = vmatpush1.msra.mxu0 %v312
        %637 = vmatprep.subr.mxu0 0.0
        %638 = vmatpush1.msra.mxu0 0.0
        %639 = vmatprep.subr.mxu0 0.0
        %640 = vmatpush1.msra.mxu0 0.0
        %641 = vmatprep.subr.mxu0 0.0
        %642 = vmatpush1.msra.mxu0 0.0
        %643 = vmatprep.subr.mxu0 0.0
        %644 = vmatpush1.msra.mxu0 0.0
        %645 = vmatprep.subr.mxu0 0.0
        %646 = vmatpush1.msra.mxu0 0.0
        %647 = vmatprep.subr.mxu0 0.0
        %648 = vmatpush1.msra.mxu0 0.0
        %649 = vmatprep.subr.mxu0 0.0
        %650 = vmatpush1.msra.mxu0 0.0
        %651 = vmatprep.subr.mxu0 0.0
        %652 = vmatpush1.msra.mxu0 0.0
        %653 = vmatprep.subr.mxu0 0.0
        %654 = vmatpush1.msra.mxu0 0.0
        %655 = vmatprep.subr.mxu0 0.0
        %656 = vmatpush1.msra.mxu0 0.0
        %657 = vmatprep.subr.mxu0 0.0
        %658 = vmatpush1.msra.mxu0 0.0
        %659 = vmatprep.subr.mxu0 0.0
        %660 = vmatpush1.msra.mxu0 0.0
        %661 = vmatprep.subr.mxu0 0.0
        %662 = vmatpush1.msra.mxu0 0.0
        %663 = vmatprep.subr.mxu0 0.0
        %664 = vmatpush1.msra.mxu0 0.0
        %665 = vmatprep.subr.mxu0 0.0
        %666 = vmatpush1.msra.mxu0 0.0
        %667 = vmatprep.subr.mxu0 0.0
        %668 = vmatpush1.msra.mxu0 0.0
        %669 = vmatprep.subr.mxu0 0.0
        %670 = vmatpush1.msra.mxu0 0.0
        %671 = vmatprep.subr.mxu0 0.0
        %672 = vmatpush1.msra.mxu0 0.0
        %673 = vmatprep.subr.mxu0 0.0
        %674 = vmatpush1.msra.mxu0 0.0
        %675 = vmatprep.subr.mxu0 0.0
        %676 = vmatpush1.msra.mxu0 0.0
        %677 = vmatprep.subr.mxu0 0.0
        %678 = vmatpush1.msra.mxu0 0.0
        %679 = vmatprep.subr.mxu0 0.0
        %680 = vmatpush1.msra.mxu0 0.0
        %681 = vmatprep.subr.mxu0 0.0
        %682 = vmatpush1.msra.mxu0 0.0
        %683 = vmatprep.subr.mxu0 0.0
        %684 = vmatpush1.msra.mxu0 0.0
        %685 = vmatprep.mubr.f32.mxu0 0.0
        %686 = vmatmul.mubr.f32.gmra.mrb[0].mxu0 %v610
        %v687 = vpop.f32.mrb[0].mxu0
        %v688 = vadd.f32 %v591, %v687
        %v689 = vpop.f32.mrb[0].mxu0
        %690 = vmatprep.mubr.f32.mxu0 0.0
        %691 = vmatmul.mubr.f32.gmra.mrb[0].mxu0 %v613
        %v692 = vpop.f32.mrb[0].mxu0
        %v693 = vadd.f32 %v596, %v692
        %v694 = vpop.f32.mrb[0].mxu0
        %695 = vmatprep.mubr.f32.mxu0 0.0
        %696 = vmatmul.mubr.f32.gmra.mrb[0].mxu0 %v616
        %v697 = vpop.f32.mrb[0].mxu0
        %v698 = vadd.f32 %v601, %v697
        %v699 = vpop.f32.mrb[0].mxu0
        %700 = vmatprep.mubr.f32.mxu0 0.0
        %701 = vmatmul.mubr.f32.gmra.mrb[0].mxu0 %v619
        %v702 = vpop.f32.mrb[0].mxu0
        %v703 = vadd.f32 %v606, %v702
        %v704 = vpop.f32.mrb[0].mxu0
        %705 = vdwg.mxu0
        %706 = vst [vmem:[%s291] sm:$0xff] %v688
        %707 = vst [vmem:[%s291 + $0x8] sm:$0xff] %v693
        %708 = vst [vmem:[%s291 + $0x10] sm:$0xff] %v698
        %709 = vst [vmem:[%s291 + $0x18] sm:$0xff] %v703
        %s710 = sand.u32 %s182, 1
        %s711 = scalar_lea.sflag [#allocation4], %s710
        %s712 = sand.u32 %s182, 1
        %s713 = smul.addr %s712, 32
        %s714 = scalar_lea.vmem [#allocation3], %s713
        // Predicated region
        $region45: #{tpu_custom_call.1} parent=43 // pred_check
          %p715 = pneg %p192
        $region46: #{tpu_custom_call.1} parent=43 // pred_check_branch
          %717 = sbr.rel (%p715) target = $region48
        $region47: #{tpu_custom_call.1} parent=43 // pred_region
          %s719 = ssub.s32 512, 512
          %720 = vsyncadd %s711, %s719
          %s721 = smul.addr %s24, 4
          %s722 = sadd.s32 %s25, %s721
          %s723 = smul.addr %s722, 128
          %s724 = scalar_lea.hbm %s6, %s723
          %s725 = sshll.u32 %s714, 4
          %s726 = int_to_ptr.vmem [resolvable:$true] %s725
          %731 = dma.vmem_to_hbm [thread:$0]  %s726, 512, %s724, %s711, 128, 128, 8
        $region48: #{tpu_custom_call.1} parent=43 // pred_fallthru
          _
      $region44: #{tpu_custom_call.1} parent=5 // pred_fallthru
        _
      %p732 = scmp.le.s32.totalorder 2, %s15
      // Predicated region
      $region49: #{tpu_custom_call.1} parent=5 // pred_check
        %p733 = pneg %p732
      $region50: #{tpu_custom_call.1} parent=5 // pred_check_branch
        %735 = sbr.rel (%p733) target = $region52
      $region51: #{tpu_custom_call.1} parent=5 // pred_region
        %s736 = ssub.s32 %s15, 2
        // Predicated region
        $region53: #{tpu_custom_call.1} parent=51 // pred_check
          %p737 = pneg %p198
        $region54: #{tpu_custom_call.1} parent=51 // pred_check_branch
          %739 = sbr.rel (%p737) target = $region56
        $region55: #{tpu_custom_call.1} parent=51 // pred_region
          %s740 = sand.u32 %s183, 1
          %s741 = scalar_lea.sflag [#allocation4], %s740
          %s742 = sand.u32 %s183, 1
          %s743 = smul.addr %s742, 32
          %s744 = scalar_lea.vmem [#allocation3], %s743
          %745 = dma.done %s741, 512
        $region56: #{tpu_custom_call.1} parent=51 // pred_fallthru
          _
      $region52: #{tpu_custom_call.1} parent=5 // pred_fallthru
        _
    $region6: #{tpu_custom_call.1} parent=1 // loop_footer
      %s19 = sadd.s32 1, %s15
    $region7: #{tpu_custom_call.1} parent=1 // loop_footer_branch
      %14 = sbr.rel target = $region3
    $region8: #{tpu_custom_call.1} parent=1 // loop_exit
      _
    %746 = vsyncpa [#allocation4], 1
    %s747 = scalar_lea.sflag [#allocation4], 1
    %748 = vsyncpa %s747, 1

</llo_original>
